<compile_context>
chip_gen: v7x
topology: tpu7x:2x2x1
jax: 0.10.0
libtpu: 0.0.40
codegen_flags: <defaults>
</compile_context>

<pallas_src>
import jax
import jax.numpy as jnp
from jax.experimental import pallas as pl
from jax.experimental.pallas import tpu as pltpu


def _mlp_kernel(x_ref, w1_ref, b1_ref, w2_ref, b2_ref, o_ref):
    x = x_ref[...]                                   # (TB, state_dim) f32
    w1 = w1_ref[...]                                 # (state_dim, H)  f32
    state_dim = x.shape[1]

    # ---- Layer 1: tiny-K contraction on the VPU (unrolled broadcast-MACs) ----
    h = x[:, 0:1] * w1[0:1, :]                       # (TB,1)*(1,H) -> (TB,H)
    for k in range(1, state_dim):                    # static unroll (state_dim is tiny)
        h = h + x[:, k:k + 1] * w1[k:k + 1, :]
    h = h + b1_ref[...]                              # (TB,H) + (1,H) broadcast
    h = jnp.maximum(h, 0.0)                          # ReLU (f32 on the VPU)

    # ---- Layer 2: 512x256 matmul on the MXU, bf16 inputs / f32 accumulate ----
    o = jnp.dot(h.astype(jnp.bfloat16), w2_ref[...],
                preferred_element_type=jnp.float32)
    o = o + b2_ref[...]                              # (TB,256) + (1,256) broadcast
    o_ref[...] = o.astype(o_ref.dtype)


def observation_encoder(x, w1, b1, w2, b2, *, block_b=256):
    """x: (B, state_dim) f32. w2 expected in bf16. Returns (B, 256) f32."""
    B, state_dim = x.shape
    hidden = w1.shape[1]
    out_dim = w2.shape[1]

    # Pad batch to a multiple of 8 (full-sublane stores); tile at TB rows per grid step.
    Bp = max(8, 8 * pl.cdiv(B, 8))
    tb = min(block_b, Bp)
    Bp = tb * pl.cdiv(Bp, tb)
    if Bp != B:
        x = jnp.pad(x, ((0, Bp - B), (0, 0)))

    vmem = pltpu.MemorySpace.VMEM
    out = pl.pallas_call(
        _mlp_kernel,
        out_shape=jax.ShapeDtypeStruct((Bp, out_dim), jnp.float32),
        grid=(Bp // tb,),
        in_specs=[
            pl.BlockSpec((tb, state_dim), lambda i: (i, 0), memory_space=vmem),
            # Weights/biases: constant index_maps -> single DMA, resident across steps.
            pl.BlockSpec((state_dim, hidden), lambda i: (0, 0), memory_space=vmem),
            pl.BlockSpec((1, hidden), lambda i: (0, 0), memory_space=vmem),
            pl.BlockSpec((hidden, out_dim), lambda i: (0, 0), memory_space=vmem),
            pl.BlockSpec((1, out_dim), lambda i: (0, 0), memory_space=vmem),
        ],
        out_specs=pl.BlockSpec((tb, out_dim), lambda i: (i, 0), memory_space=vmem),
        compiler_params=pltpu.CompilerParams(
            dimension_semantics=("parallel",)),
    )(x, w1, b1, w2, b2)

    return out[:B]


def init_params(key, state_dim, hidden=512, out_dim=256):
    """Deterministic init mimicking PyTorch nn.Linear default:
    U(-1/sqrt(fan_in), 1/sqrt(fan_in)) for weight and bias. w2 stored in bf16
    (layer-2 MXU operand); everything else f32."""
    k1, k2, k3, k4 = jax.random.split(key, 4)
    bound1 = 1.0 / jnp.sqrt(jnp.float32(state_dim))
    bound2 = 1.0 / jnp.sqrt(jnp.float32(hidden))
    w1 = jax.random.uniform(k1, (state_dim, hidden), jnp.float32, -bound1, bound1)
    b1 = jax.random.uniform(k2, (1, hidden), jnp.float32, -bound1, bound1)
    w2 = jax.random.uniform(k3, (hidden, out_dim), jnp.float32, -bound2, bound2)
    b2 = jax.random.uniform(k4, (1, out_dim), jnp.float32, -bound2, bound2)
    return w1, b1, w2.astype(jnp.bfloat16), b2


if __name__ == "__main__":
    key = jax.random.PRNGKey(0)
    kx, kp = jax.random.split(key)

    batch = 2
    state_dim = 5  # [robot_x, robot_y, block_x, block_y, block_angle]

    x = jax.random.normal(kx, (batch, state_dim), jnp.float32)
    w1, b1, w2, b2 = init_params(kp, state_dim)

    out = observation_encoder(x, w1, b1, w2, b2)
    out = jax.block_until_ready(out)

    # Reference in plain JAX with the same bf16 rounding on the layer-2 operands.
    h_ref = jnp.maximum(x @ w1 + b1, 0.0)
    ref = (h_ref.astype(jnp.bfloat16).astype(jnp.float32)
           @ w2.astype(jnp.float32)) + b2

    assert out.shape == (batch, 256), out.shape
    assert jnp.allclose(out, ref, atol=2e-3, rtol=2e-3), \
        float(jnp.max(jnp.abs(out - ref)))

    print("KERNEL_OK")
</pallas_src>

<mosaic_0001>
module attributes {stable_mosaic.version = 11 : i64} {
  func.func @_mlp_kernel(%arg0: i32, %arg1: memref<8x5xf32, #tpu.memory_space<vmem>>, %arg2: memref<5x512xf32, #tpu.memory_space<vmem>>, %arg3: memref<1x512xf32, #tpu.memory_space<vmem>>, %arg4: memref<512x256xbf16, #tpu.memory_space<vmem>>, %arg5: memref<1x256xf32, #tpu.memory_space<vmem>>, %arg6: memref<8x256xf32, #tpu.memory_space<vmem>>) attributes {dimension_semantics = [#tpu.dimension_semantics<parallel>], iteration_bounds = array<i64: 1>, scalar_prefetch = 0 : i64, scratch_operands = 0 : i64, tpu.core_type = #tpu.core_type<tc>, window_params = [{transform_indices = @transform_0, window_bounds = array<i64: 8, 5>}, {pipeline_mode = #tpu.pipeline_mode<synchronous>, transform_indices = @transform_1, window_bounds = array<i64: 5, 512>}, {pipeline_mode = #tpu.pipeline_mode<synchronous>, transform_indices = @transform_2, window_bounds = array<i64: 1, 512>}, {pipeline_mode = #tpu.pipeline_mode<synchronous>, transform_indices = @transform_3, window_bounds = array<i64: 512, 256>}, {pipeline_mode = #tpu.pipeline_mode<synchronous>, transform_indices = @transform_4, window_bounds = array<i64: 1, 256>}, {transform_indices = @transform_5, window_bounds = array<i64: 8, 256>}]} {
    %c0 = arith.constant 0 : index
    %c0_0 = arith.constant 0 : index
    %0 = vector.load %arg1[%c0, %c0_0] : memref<8x5xf32, #tpu.memory_space<vmem>>, vector<8x5xf32>
    %c0_1 = arith.constant 0 : index
    %c0_2 = arith.constant 0 : index
    %1 = vector.load %arg2[%c0_1, %c0_2] : memref<5x512xf32, #tpu.memory_space<vmem>>, vector<5x512xf32>
    %2 = vector.extract_strided_slice %0 {offsets = [0, 0], sizes = [8, 1], strides = [1, 1]} : vector<8x5xf32> to vector<8x1xf32>
    %3 = vector.extract_strided_slice %1 {offsets = [0, 0], sizes = [1, 512], strides = [1, 1]} : vector<5x512xf32> to vector<1x512xf32>
    %4 = vector.broadcast %2 : vector<8x1xf32> to vector<8x512xf32>
    %5 = vector.broadcast %3 : vector<1x512xf32> to vector<8x512xf32>
    %6 = arith.mulf %4, %5 : vector<8x512xf32>
    %7 = vector.extract_strided_slice %0 {offsets = [0, 1], sizes = [8, 1], strides = [1, 1]} : vector<8x5xf32> to vector<8x1xf32>
    %8 = vector.extract_strided_slice %1 {offsets = [1, 0], sizes = [1, 512], strides = [1, 1]} : vector<5x512xf32> to vector<1x512xf32>
    %9 = vector.broadcast %7 : vector<8x1xf32> to vector<8x512xf32>
    %10 = vector.broadcast %8 : vector<1x512xf32> to vector<8x512xf32>
    %11 = arith.mulf %9, %10 : vector<8x512xf32>
    %12 = arith.addf %6, %11 : vector<8x512xf32>
    %13 = vector.extract_strided_slice %0 {offsets = [0, 2], sizes = [8, 1], strides = [1, 1]} : vector<8x5xf32> to vector<8x1xf32>
    %14 = vector.extract_strided_slice %1 {offsets = [2, 0], sizes = [1, 512], strides = [1, 1]} : vector<5x512xf32> to vector<1x512xf32>
    %15 = vector.broadcast %13 : vector<8x1xf32> to vector<8x512xf32>
    %16 = vector.broadcast %14 : vector<1x512xf32> to vector<8x512xf32>
    %17 = arith.mulf %15, %16 : vector<8x512xf32>
    %18 = arith.addf %12, %17 : vector<8x512xf32>
    %19 = vector.extract_strided_slice %0 {offsets = [0, 3], sizes = [8, 1], strides = [1, 1]} : vector<8x5xf32> to vector<8x1xf32>
    %20 = vector.extract_strided_slice %1 {offsets = [3, 0], sizes = [1, 512], strides = [1, 1]} : vector<5x512xf32> to vector<1x512xf32>
    %21 = vector.broadcast %19 : vector<8x1xf32> to vector<8x512xf32>
    %22 = vector.broadcast %20 : vector<1x512xf32> to vector<8x512xf32>
    %23 = arith.mulf %21, %22 : vector<8x512xf32>
    %24 = arith.addf %18, %23 : vector<8x512xf32>
    %25 = vector.extract_strided_slice %0 {offsets = [0, 4], sizes = [8, 1], strides = [1, 1]} : vector<8x5xf32> to vector<8x1xf32>
    %26 = vector.extract_strided_slice %1 {offsets = [4, 0], sizes = [1, 512], strides = [1, 1]} : vector<5x512xf32> to vector<1x512xf32>
    %27 = vector.broadcast %25 : vector<8x1xf32> to vector<8x512xf32>
    %28 = vector.broadcast %26 : vector<1x512xf32> to vector<8x512xf32>
    %29 = arith.mulf %27, %28 : vector<8x512xf32>
    %30 = arith.addf %24, %29 : vector<8x512xf32>
    %c0_3 = arith.constant 0 : index
    %c0_4 = arith.constant 0 : index
    %31 = vector.load %arg3[%c0_3, %c0_4] : memref<1x512xf32, #tpu.memory_space<vmem>>, vector<1x512xf32>
    %32 = vector.broadcast %31 : vector<1x512xf32> to vector<8x512xf32>
    %33 = arith.addf %30, %32 : vector<8x512xf32>
    %cst = arith.constant 0.000000e+00 : f32
    %34 = vector.broadcast %cst : f32 to vector<8x512xf32>
    %35 = arith.maximumf %33, %34 : vector<8x512xf32>
    %36 = arith.truncf %35 : vector<8x512xf32> to vector<8x512xbf16>
    %c0_5 = arith.constant 0 : index
    %c0_6 = arith.constant 0 : index
    %37 = vector.load %arg4[%c0_5, %c0_6] : memref<512x256xbf16, #tpu.memory_space<vmem>>, vector<512x256xbf16>
    %cst_7 = arith.constant dense<0.000000e+00> : vector<8x256xf32>
    %38 = tpu.matmul %36, %37, %cst_7 {dimension_numbers = #tpu.dot_dimension_numbers<[1], [0], [0], [1], [0, 0, 1, 1], [], []>} : vector<8x512xbf16>, vector<512x256xbf16>, vector<8x256xf32> -> vector<8x256xf32>
    %c0_8 = arith.constant 0 : index
    %c0_9 = arith.constant 0 : index
    %39 = vector.load %arg5[%c0_8, %c0_9] : memref<1x256xf32, #tpu.memory_space<vmem>>, vector<1x256xf32>
    %40 = vector.broadcast %39 : vector<1x256xf32> to vector<8x256xf32>
    %41 = arith.addf %38, %40 : vector<8x256xf32>
    %c0_10 = arith.constant 0 : index
    %c0_11 = arith.constant 0 : index
    %42 = vector.load %arg6[%c0_10, %c0_11] : memref<8x256xf32, #tpu.memory_space<vmem>>, vector<8x256xf32>
    tpu.vector_store %arg6[%c0_10, %c0_11], %41 {strides = array<i32>} : memref<8x256xf32, #tpu.memory_space<vmem>>, vector<8x256xf32>,
    return
  }
  func.func @transform_0(%arg0: i32) -> (i32, i32) {
    %c0_i32 = arith.constant 0 : i32
    %c0_i32_0 = arith.constant 0 : i32
    return %arg0, %c0_i32 : i32, i32
  }
  func.func @transform_1(%arg0: i32) -> (i32, i32) {
    %c0_i32 = arith.constant 0 : i32
    %c0_i32_0 = arith.constant 0 : i32
    %c0_i32_1 = arith.constant 0 : i32
    return %c0_i32, %c0_i32_0 : i32, i32
  }
  func.func @transform_2(%arg0: i32) -> (i32, i32) {
    %c0_i32 = arith.constant 0 : i32
    %c0_i32_0 = arith.constant 0 : i32
    %c0_i32_1 = arith.constant 0 : i32
    return %c0_i32, %c0_i32_0 : i32, i32
  }
  func.func @transform_3(%arg0: i32) -> (i32, i32) {
    %c0_i32 = arith.constant 0 : i32
    %c0_i32_0 = arith.constant 0 : i32
    %c0_i32_1 = arith.constant 0 : i32
    return %c0_i32, %c0_i32_0 : i32, i32
  }
  func.func @transform_4(%arg0: i32) -> (i32, i32) {
    %c0_i32 = arith.constant 0 : i32
    %c0_i32_0 = arith.constant 0 : i32
    %c0_i32_1 = arith.constant 0 : i32
    return %c0_i32, %c0_i32_0 : i32, i32
  }
  func.func @transform_5(%arg0: i32) -> (i32, i32) {
    %c0_i32 = arith.constant 0 : i32
    %c0_i32_0 = arith.constant 0 : i32
    return %arg0, %c0_i32 : i32, i32
  }
}

</mosaic_0001>

<llo_original>
// kernel: tpu_custom_call.1
$region0: #{tpu_custom_call.1}
  #allocation0 [shape = 'u32[]', space=smem, size = 0x4, offset = 0x4, fixed_abs, tag = 'smem constant byte address 0x4 - core index']
  #allocation1 [shape = 'u32[144,128]{1,0:T(1,128)}', space=vmem, size = 0x12000, scoped, tag = 'internal scratch']
  %s0 = inlined_call_operand.hbm [shape: f32[8,5], index: 0, kind: input, shape index: {}]
  %s1 = inlined_call_operand.hbm [shape: f32[5,512], index: 1, kind: input, shape index: {}]
  %s2 = inlined_call_operand.vmem [shape: f32[1,512], index: 2, kind: input, shape index: {}]
  %s3 = inlined_call_operand.hbm [shape: bf16[512,256], index: 3, kind: input, shape index: {}]
  %s4 = inlined_call_operand.vmem [shape: f32[1,256], index: 4, kind: input, shape index: {}]
  %s5 = inlined_call_operand.hbm [shape: f32[8,256], index: 5, kind: output, shape index: {}]
  %s6 = sld [smem:[#allocation0]]
  $region42: #{tpu_custom_call.1} parent=0
    _
  %s8 = ssub.s32 1, %s6
  %s9 = scalar_select 0, %s8, %s6
  $region1: #{tpu_custom_call.1} parent=0
    #allocation2 [shape = 'u8[4096]{0}', space=vmem, size = 0x1000, scoped, tag = 'input window, operand 0, single buffered']
    #allocation3 [shape = 's32[1]{0}', space=sflag, size = 0x4, scoped, tag = 'scoped memory for tpu_custom_call.1']
    #allocation4 [shape = 's32[1]{0}', space=sflag, size = 0x4, scoped, tag = 'scoped memory for tpu_custom_call.1']
    #allocation5 [shape = 'u8[16384]{0}', space=vmem, size = 0x4000, scoped, tag = 'input window, operand 1, single buffered']
    #allocation6 [shape = 's32[1]{0}', space=sflag, size = 0x4, scoped, tag = 'scoped memory for tpu_custom_call.1']
    #allocation7 [shape = 'u8[262144]{0}', space=vmem, size = 0x40000, scoped, tag = 'input window, operand 3, single buffered']
    #allocation8 [shape = 'u8[8192]{0}', space=vmem, size = 0x2000, scoped, tag = 'output window, operand 0, single buffered']
    %10 = vsyncpa [#allocation3], 0
    %11 = vsyncpa [#allocation6], 0
    %12 = vsyncpa [#allocation4], 0
    // Predicated region
    $region2: #{tpu_custom_call.1} parent=1 // pred_check
      _
    $region3: #{tpu_custom_call.1} parent=1 // pred_check_branch
      %14 = sbr.rel (0) target = $region5
    $region4: #{tpu_custom_call.1} parent=1 // pred_region
      %s16 = ssub.s32 128, 128
      %17 = vsyncadd [#allocation3], %s16
      %s19 = sshll.u32 [#allocation2], 4
      %s20 = int_to_ptr.vmem [resolvable:$true] %s19
      %22 = dma.hbm_to_vmem [thread:$0]  %s0, 128, %s20, [#allocation3]
    $region5: #{tpu_custom_call.1} parent=1 // pred_fallthru
      _
    // Predicated region
    $region6: #{tpu_custom_call.1} parent=1 // pred_check
      _
    $region7: #{tpu_custom_call.1} parent=1 // pred_check_branch
      %24 = sbr.rel (0) target = $region9
    $region8: #{tpu_custom_call.1} parent=1 // pred_region
      %s26 = ssub.s32 512, 512
      %27 = vsyncadd [#allocation6], %s26
      %s29 = sshll.u32 [#allocation5], 4
      %s30 = int_to_ptr.vmem [resolvable:$true] %s29
      %32 = dma.hbm_to_vmem [thread:$0]  %s1, 512, %s30, [#allocation6]
    $region9: #{tpu_custom_call.1} parent=1 // pred_fallthru
      _
    // Predicated region
    $region10: #{tpu_custom_call.1} parent=1 // pred_check
      _
    $region11: #{tpu_custom_call.1} parent=1 // pred_check_branch
      %34 = sbr.rel (0) target = $region13
    $region12: #{tpu_custom_call.1} parent=1 // pred_region
      _
    $region13: #{tpu_custom_call.1} parent=1 // pred_fallthru
      _
    // Predicated region
    $region14: #{tpu_custom_call.1} parent=1 // pred_check
      _
    $region15: #{tpu_custom_call.1} parent=1 // pred_check_branch
      %36 = sbr.rel (0) target = $region17
    $region16: #{tpu_custom_call.1} parent=1 // pred_region
      %s38 = ssub.s32 8192, 8192
      %39 = vsyncadd [#allocation6], %s38
      %s40 = sshll.u32 [#allocation7], 4
      %s41 = int_to_ptr.vmem [resolvable:$true] %s40
      %46 = dma.hbm_to_vmem [thread:$0]  %s3, 8192, %s41, [#allocation6], 128, 128, 8
    $region17: #{tpu_custom_call.1} parent=1 // pred_fallthru
      _
    // Predicated region
    $region18: #{tpu_custom_call.1} parent=1 // pred_check
      _
    $region19: #{tpu_custom_call.1} parent=1 // pred_check_branch
      %48 = sbr.rel (0) target = $region21
    $region20: #{tpu_custom_call.1} parent=1 // pred_region
      _
    $region21: #{tpu_custom_call.1} parent=1 // pred_fallthru
      _
    // Predicated region
    $region22: #{tpu_custom_call.1} parent=1 // pred_check
      _
    $region23: #{tpu_custom_call.1} parent=1 // pred_check_branch
      %50 = sbr.rel (0) target = $region25
    $region24: #{tpu_custom_call.1} parent=1 // pred_region
      %51 = dma.done [#allocation3], 128
    $region25: #{tpu_custom_call.1} parent=1 // pred_fallthru
      _
    // Predicated region
    $region26: #{tpu_custom_call.1} parent=1 // pred_check
      _
    $region27: #{tpu_custom_call.1} parent=1 // pred_check_branch
      %53 = sbr.rel (0) target = $region29
    $region28: #{tpu_custom_call.1} parent=1 // pred_region
      %54 = dma.done [#allocation6], 512
    $region29: #{tpu_custom_call.1} parent=1 // pred_fallthru
      _
    // Predicated region
    $region30: #{tpu_custom_call.1} parent=1 // pred_check
      _
    $region31: #{tpu_custom_call.1} parent=1 // pred_check_branch
      %56 = sbr.rel (0) target = $region33
    $region32: #{tpu_custom_call.1} parent=1 // pred_region
      %57 = dma.done [#allocation6], 8192
    $region33: #{tpu_custom_call.1} parent=1 // pred_fallthru
      _
    %v58 = vld [vmem:[#allocation2] sm:$0xff]
    %v59 = vld [vmem:[#allocation5] sm:$0x1f]
    %v60 = vld [vmem:[#allocation5 + $0x8] sm:$0x1f]
    %v61 = vld [vmem:[#allocation5 + $0x10] sm:$0x1f]
    %v62 = vld [vmem:[#allocation5 + $0x18] sm:$0x1f]
    %64 = vset.pattern.permute.xlu0 0
    %65 = vperm.xlu0 %64, %v58
    %v66 = vpop.permute.xlu0 %65
    %v68 = vlaneseq
    %v69 = vshrl.u32 %v68, 7
    %v70 = vsub.s32 0, %v69
    %v71 = vrot.slane %v59, %v70
    %v72 = vlaneseq
    %v73 = vshrl.u32 %v72, 7
    %v74 = vsub.s32 0, %v73
    %v75 = vrot.slane %v60, %v74
    %v76 = vlaneseq
    %v77 = vshrl.u32 %v76, 7
    %v78 = vsub.s32 0, %v77
    %v79 = vrot.slane %v61, %v78
    %v80 = vlaneseq
    %v81 = vshrl.u32 %v80, 7
    %v82 = vsub.s32 0, %v81
    %v83 = vrot.slane %v62, %v82
    %v84 = vmul.f32 %v66, %v71
    %v85 = vmul.f32 %v66, %v75
    %v86 = vmul.f32 %v66, %v79
    %v87 = vmul.f32 %v66, %v83
    %88 = vset.pattern.permute.xlu0 1
    %89 = vperm.xlu0 %88, %v58
    %v90 = vpop.permute.xlu0 %89
    %v92 = vlaneseq
    %v93 = vshrl.u32 %v92, 7
    %v94 = vsub.s32 1, %v93
    %v95 = vrot.slane %v59, %v94
    %v96 = vlaneseq
    %v97 = vshrl.u32 %v96, 7
    %v98 = vsub.s32 1, %v97
    %v99 = vrot.slane %v60, %v98
    %v100 = vlaneseq
    %v101 = vshrl.u32 %v100, 7
    %v102 = vsub.s32 1, %v101
    %v103 = vrot.slane %v61, %v102
    %v104 = vlaneseq
    %v105 = vshrl.u32 %v104, 7
    %v106 = vsub.s32 1, %v105
    %v107 = vrot.slane %v62, %v106
    %v108 = vmul.f32 %v90, %v95
    %v109 = vmul.f32 %v90, %v99
    %v110 = vmul.f32 %v90, %v103
    %v111 = vmul.f32 %v90, %v107
    %v112 = vadd.f32 %v84, %v108
    %v113 = vadd.f32 %v85, %v109
    %v114 = vadd.f32 %v86, %v110
    %v115 = vadd.f32 %v87, %v111
    %116 = vset.pattern.permute.xlu0 2
    %117 = vperm.xlu0 %116, %v58
    %v118 = vpop.permute.xlu0 %117
    %v120 = vlaneseq
    %v121 = vshrl.u32 %v120, 7
    %v122 = vsub.s32 2, %v121
    %v123 = vrot.slane %v59, %v122
    %v124 = vlaneseq
    %v125 = vshrl.u32 %v124, 7
    %v126 = vsub.s32 2, %v125
    %v127 = vrot.slane %v60, %v126
    %v128 = vlaneseq
    %v129 = vshrl.u32 %v128, 7
    %v130 = vsub.s32 2, %v129
    %v131 = vrot.slane %v61, %v130
    %v132 = vlaneseq
    %v133 = vshrl.u32 %v132, 7
    %v134 = vsub.s32 2, %v133
    %v135 = vrot.slane %v62, %v134
    %v136 = vmul.f32 %v118, %v123
    %v137 = vmul.f32 %v118, %v127
    %v138 = vmul.f32 %v118, %v131
    %v139 = vmul.f32 %v118, %v135
    %v140 = vadd.f32 %v112, %v136
    %v141 = vadd.f32 %v113, %v137
    %v142 = vadd.f32 %v114, %v138
    %v143 = vadd.f32 %v115, %v139
    %144 = vset.pattern.permute.xlu0 3
    %145 = vperm.xlu0 %144, %v58
    %v146 = vpop.permute.xlu0 %145
    %v148 = vlaneseq
    %v149 = vshrl.u32 %v148, 7
    %v150 = vsub.s32 3, %v149
    %v151 = vrot.slane %v59, %v150
    %v152 = vlaneseq
    %v153 = vshrl.u32 %v152, 7
    %v154 = vsub.s32 3, %v153
    %v155 = vrot.slane %v60, %v154
    %v156 = vlaneseq
    %v157 = vshrl.u32 %v156, 7
    %v158 = vsub.s32 3, %v157
    %v159 = vrot.slane %v61, %v158
    %v160 = vlaneseq
    %v161 = vshrl.u32 %v160, 7
    %v162 = vsub.s32 3, %v161
    %v163 = vrot.slane %v62, %v162
    %v164 = vmul.f32 %v146, %v151
    %v165 = vmul.f32 %v146, %v155
    %v166 = vmul.f32 %v146, %v159
    %v167 = vmul.f32 %v146, %v163
    %v168 = vadd.f32 %v140, %v164
    %v169 = vadd.f32 %v141, %v165
    %v170 = vadd.f32 %v142, %v166
    %v171 = vadd.f32 %v143, %v167
    %172 = vset.pattern.permute.xlu0 4
    %173 = vperm.xlu0 %172, %v58
    %v174 = vpop.permute.xlu0 %173
    %v176 = vlaneseq
    %v177 = vshrl.u32 %v176, 7
    %v178 = vsub.s32 4, %v177
    %v179 = vrot.slane %v59, %v178
    %v180 = vlaneseq
    %v181 = vshrl.u32 %v180, 7
    %v182 = vsub.s32 4, %v181
    %v183 = vrot.slane %v60, %v182
    %v184 = vlaneseq
    %v185 = vshrl.u32 %v184, 7
    %v186 = vsub.s32 4, %v185
    %v187 = vrot.slane %v61, %v186
    %v188 = vlaneseq
    %v189 = vshrl.u32 %v188, 7
    %v190 = vsub.s32 4, %v189
    %v191 = vrot.slane %v62, %v190
    %v192 = vmul.f32 %v174, %v179
    %v193 = vmul.f32 %v174, %v183
    %v194 = vmul.f32 %v174, %v187
    %v195 = vmul.f32 %v174, %v191
    %v196 = vadd.f32 %v168, %v192
    %v197 = vadd.f32 %v169, %v193
    %v198 = vadd.f32 %v170, %v194
    %v199 = vadd.f32 %v171, %v195
    %v200 = vld [vmem:[%s2] sm:$0xf]
    %v202 = vlaneseq
    %v203 = vshrl.u32 %v202, 7
    %v204 = vsub.s32 0, %v203
    %v205 = vrot.slane %v200, %v204
    %v206 = vlaneseq
    %v207 = vshrl.u32 %v206, 7
    %v208 = vsub.s32 1, %v207
    %v209 = vrot.slane %v200, %v208
    %v210 = vlaneseq
    %v211 = vshrl.u32 %v210, 7
    %v212 = vsub.s32 2, %v211
    %v213 = vrot.slane %v200, %v212
    %v214 = vlaneseq
    %v215 = vshrl.u32 %v214, 7
    %v216 = vsub.s32 3, %v215
    %v217 = vrot.slane %v200, %v216
    %v222 = vadd.f32 %v196, %v205
    %v223 = vadd.f32 %v197, %v209
    %v224 = vadd.f32 %v198, %v213
    %v225 = vadd.f32 %v199, %v217
    %v226 = vmax.f32 %v222, 0.0
    %v227 = vmax.f32 %v223, 0.0
    %v228 = vmax.f32 %v224, 0.0
    %v229 = vmax.f32 %v225, 0.0
    %v230 = vpack.c.bf16 %v226, %v226
    %v231 = vpack.c.bf16 %v227, %v227
    %v232 = vpack.c.bf16 %v228, %v228
    %v233 = vpack.c.bf16 %v229, %v229
    %v234 = vld [vmem:[#allocation7] sm:$0xff]
    %v235 = vld [vmem:[#allocation7 + $0x8] sm:$0xff]
    %v236 = vld [vmem:[#allocation7 + $0x10] sm:$0xff]
    %v237 = vld [vmem:[#allocation7 + $0x18] sm:$0xff]
    %v238 = vld [vmem:[#allocation7 + $0x20] sm:$0xff]
    %v239 = vld [vmem:[#allocation7 + $0x28] sm:$0xff]
    %v240 = vld [vmem:[#allocation7 + $0x30] sm:$0xff]
    %v241 = vld [vmem:[#allocation7 + $0x38] sm:$0xff]
    %v242 = vld [vmem:[#allocation7 + $0x40] sm:$0xff]
    %v243 = vld [vmem:[#allocation7 + $0x48] sm:$0xff]
    %v244 = vld [vmem:[#allocation7 + $0x50] sm:$0xff]
    %v245 = vld [vmem:[#allocation7 + $0x58] sm:$0xff]
    %v246 = vld [vmem:[#allocation7 + $0x60] sm:$0xff]
    %v247 = vld [vmem:[#allocation7 + $0x68] sm:$0xff]
    %v248 = vld [vmem:[#allocation7 + $0x70] sm:$0xff]
    %v249 = vld [vmem:[#allocation7 + $0x78] sm:$0xff]
    %v250 = vld [vmem:[#allocation7 + $0x80] sm:$0xff]
    %v251 = vld [vmem:[#allocation7 + $0x88] sm:$0xff]
    %v252 = vld [vmem:[#allocation7 + $0x90] sm:$0xff]
    %v253 = vld [vmem:[#allocation7 + $0x98] sm:$0xff]
    %v254 = vld [vmem:[#allocation7 + $0xa0] sm:$0xff]
    %v255 = vld [vmem:[#allocation7 + $0xa8] sm:$0xff]
    %v256 = vld [vmem:[#allocation7 + $0xb0] sm:$0xff]
    %v257 = vld [vmem:[#allocation7 + $0xb8] sm:$0xff]
    %v258 = vld [vmem:[#allocation7 + $0xc0] sm:$0xff]
    %v259 = vld [vmem:[#allocation7 + $0xc8] sm:$0xff]
    %v260 = vld [vmem:[#allocation7 + $0xd0] sm:$0xff]
    %v261 = vld [vmem:[#allocation7 + $0xd8] sm:$0xff]
    %v262 = vld [vmem:[#allocation7 + $0xe0] sm:$0xff]
    %v263 = vld [vmem:[#allocation7 + $0xe8] sm:$0xff]
    %v264 = vld [vmem:[#allocation7 + $0xf0] sm:$0xff]
    %v265 = vld [vmem:[#allocation7 + $0xf8] sm:$0xff]
    %v266 = vld [vmem:[#allocation7 + $0x100] sm:$0xff]
    %v267 = vld [vmem:[#allocation7 + $0x108] sm:$0xff]
    %v268 = vld [vmem:[#allocation7 + $0x110] sm:$0xff]
    %v269 = vld [vmem:[#allocation7 + $0x118] sm:$0xff]
    %v270 = vld [vmem:[#allocation7 + $0x120] sm:$0xff]
    %v271 = vld [vmem:[#allocation7 + $0x128] sm:$0xff]
    %v272 = vld [vmem:[#allocation7 + $0x130] sm:$0xff]
    %v273 = vld [vmem:[#allocation7 + $0x138] sm:$0xff]
    %v274 = vld [vmem:[#allocation7 + $0x140] sm:$0xff]
    %v275 = vld [vmem:[#allocation7 + $0x148] sm:$0xff]
    %v276 = vld [vmem:[#allocation7 + $0x150] sm:$0xff]
    %v277 = vld [vmem:[#allocation7 + $0x158] sm:$0xff]
    %v278 = vld [vmem:[#allocation7 + $0x160] sm:$0xff]
    %v279 = vld [vmem:[#allocation7 + $0x168] sm:$0xff]
    %v280 = vld [vmem:[#allocation7 + $0x170] sm:$0xff]
    %v281 = vld [vmem:[#allocation7 + $0x178] sm:$0xff]
    %v282 = vld [vmem:[#allocation7 + $0x180] sm:$0xff]
    %v283 = vld [vmem:[#allocation7 + $0x188] sm:$0xff]
    %v284 = vld [vmem:[#allocation7 + $0x190] sm:$0xff]
    %v285 = vld [vmem:[#allocation7 + $0x198] sm:$0xff]
    %v286 = vld [vmem:[#allocation7 + $0x1a0] sm:$0xff]
    %v287 = vld [vmem:[#allocation7 + $0x1a8] sm:$0xff]
    %v288 = vld [vmem:[#allocation7 + $0x1b0] sm:$0xff]
    %v289 = vld [vmem:[#allocation7 + $0x1b8] sm:$0xff]
    %v290 = vld [vmem:[#allocation7 + $0x1c0] sm:$0xff]
    %v291 = vld [vmem:[#allocation7 + $0x1c8] sm:$0xff]
    %v292 = vld [vmem:[#allocation7 + $0x1d0] sm:$0xff]
    %v293 = vld [vmem:[#allocation7 + $0x1d8] sm:$0xff]
    %v294 = vld [vmem:[#allocation7 + $0x1e0] sm:$0xff]
    %v295 = vld [vmem:[#allocation7 + $0x1e8] sm:$0xff]
    %v296 = vld [vmem:[#allocation7 + $0x1f0] sm:$0xff]
    %v297 = vld [vmem:[#allocation7 + $0x1f8] sm:$0xff]
    %v298 = vld [vmem:[%s4] sm:$0x3]
    %v300 = vlaneseq
    %v301 = vshrl.u32 %v300, 7
    %v302 = vsub.s32 0, %v301
    %v303 = vrot.slane %v298, %v302
    %v304 = vlaneseq
    %v305 = vshrl.u32 %v304, 7
    %v306 = vsub.s32 1, %v305
    %v307 = vrot.slane %v298, %v306
    %v374 = vunpack.c.l.b16 %v234
    %v375 = vunpack.c.h.b16 %v234
    %v376 = vunpack.c.l.b16 %v235
    %v377 = vunpack.c.h.b16 %v235
    %v378 = vunpack.c.l.b16 %v236
    %v379 = vunpack.c.h.b16 %v236
    %v380 = vunpack.c.l.b16 %v237
    %v381 = vunpack.c.h.b16 %v237
    %v382 = vunpack.c.l.b16 %v238
    %v383 = vunpack.c.h.b16 %v238
    %v384 = vunpack.c.l.b16 %v239
    %v385 = vunpack.c.h.b16 %v239
    %v386 = vunpack.c.l.b16 %v240
    %v387 = vunpack.c.h.b16 %v240
    %v388 = vunpack.c.l.b16 %v241
    %v389 = vunpack.c.h.b16 %v241
    %v390 = vunpack.c.l.b16 %v242
    %v391 = vunpack.c.h.b16 %v242
    %v392 = vunpack.c.l.b16 %v243
    %v393 = vunpack.c.h.b16 %v243
    %v394 = vunpack.c.l.b16 %v244
    %v395 = vunpack.c.h.b16 %v244
    %v396 = vunpack.c.l.b16 %v245
    %v397 = vunpack.c.h.b16 %v245
    %v398 = vunpack.c.l.b16 %v246
    %v399 = vunpack.c.h.b16 %v246
    %v400 = vunpack.c.l.b16 %v247
    %v401 = vunpack.c.h.b16 %v247
    %v402 = vunpack.c.l.b16 %v248
    %v403 = vunpack.c.h.b16 %v248
    %v404 = vunpack.c.l.b16 %v249
    %v405 = vunpack.c.h.b16 %v249
    %v406 = vunpack.c.l.b16 %v250
    %v407 = vunpack.c.h.b16 %v250
    %v408 = vunpack.c.l.b16 %v251
    %v409 = vunpack.c.h.b16 %v251
    %v410 = vunpack.c.l.b16 %v252
    %v411 = vunpack.c.h.b16 %v252
    %v412 = vunpack.c.l.b16 %v253
    %v413 = vunpack.c.h.b16 %v253
    %v414 = vunpack.c.l.b16 %v254
    %v415 = vunpack.c.h.b16 %v254
    %v416 = vunpack.c.l.b16 %v255
    %v417 = vunpack.c.h.b16 %v255
    %v418 = vunpack.c.l.b16 %v256
    %v419 = vunpack.c.h.b16 %v256
    %v420 = vunpack.c.l.b16 %v257
    %v421 = vunpack.c.h.b16 %v257
    %v422 = vunpack.c.l.b16 %v258
    %v423 = vunpack.c.h.b16 %v258
    %v424 = vunpack.c.l.b16 %v259
    %v425 = vunpack.c.h.b16 %v259
    %v426 = vunpack.c.l.b16 %v260
    %v427 = vunpack.c.h.b16 %v260
    %v428 = vunpack.c.l.b16 %v261
    %v429 = vunpack.c.h.b16 %v261
    %v430 = vunpack.c.l.b16 %v262
    %v431 = vunpack.c.h.b16 %v262
    %v432 = vunpack.c.l.b16 %v263
    %v433 = vunpack.c.h.b16 %v263
    %v434 = vunpack.c.l.b16 %v264
    %v435 = vunpack.c.h.b16 %v264
    %v436 = vunpack.c.l.b16 %v265
    %v437 = vunpack.c.h.b16 %v265
    %v438 = vunpack.c.l.b16 %v266
    %v439 = vunpack.c.h.b16 %v266
    %v440 = vunpack.c.l.b16 %v267
    %v441 = vunpack.c.h.b16 %v267
    %v442 = vunpack.c.l.b16 %v268
    %v443 = vunpack.c.h.b16 %v268
    %v444 = vunpack.c.l.b16 %v269
    %v445 = vunpack.c.h.b16 %v269
    %v446 = vunpack.c.l.b16 %v270
    %v447 = vunpack.c.h.b16 %v270
    %v448 = vunpack.c.l.b16 %v271
    %v449 = vunpack.c.h.b16 %v271
    %v450 = vunpack.c.l.b16 %v272
    %v451 = vunpack.c.h.b16 %v272
    %v452 = vunpack.c.l.b16 %v273
    %v453 = vunpack.c.h.b16 %v273
    %v454 = vunpack.c.l.b16 %v274
    %v455 = vunpack.c.h.b16 %v274
    %v456 = vunpack.c.l.b16 %v275
    %v457 = vunpack.c.h.b16 %v275
    %v458 = vunpack.c.l.b16 %v276
    %v459 = vunpack.c.h.b16 %v276
    %v460 = vunpack.c.l.b16 %v277
    %v461 = vunpack.c.h.b16 %v277
    %v462 = vunpack.c.l.b16 %v278
    %v463 = vunpack.c.h.b16 %v278
    %v464 = vunpack.c.l.b16 %v279
    %v465 = vunpack.c.h.b16 %v279
    %v466 = vunpack.c.l.b16 %v280
    %v467 = vunpack.c.h.b16 %v280
    %v468 = vunpack.c.l.b16 %v281
    %v469 = vunpack.c.h.b16 %v281
    %v470 = vunpack.c.l.b16 %v282
    %v471 = vunpack.c.h.b16 %v282
    %v472 = vunpack.c.l.b16 %v283
    %v473 = vunpack.c.h.b16 %v283
    %v474 = vunpack.c.l.b16 %v284
    %v475 = vunpack.c.h.b16 %v284
    %v476 = vunpack.c.l.b16 %v285
    %v477 = vunpack.c.h.b16 %v285
    %v478 = vunpack.c.l.b16 %v286
    %v479 = vunpack.c.h.b16 %v286
    %v480 = vunpack.c.l.b16 %v287
    %v481 = vunpack.c.h.b16 %v287
    %v482 = vunpack.c.l.b16 %v288
    %v483 = vunpack.c.h.b16 %v288
    %v484 = vunpack.c.l.b16 %v289
    %v485 = vunpack.c.h.b16 %v289
    %v486 = vunpack.c.l.b16 %v290
    %v487 = vunpack.c.h.b16 %v290
    %v488 = vunpack.c.l.b16 %v291
    %v489 = vunpack.c.h.b16 %v291
    %v490 = vunpack.c.l.b16 %v292
    %v491 = vunpack.c.h.b16 %v292
    %v492 = vunpack.c.l.b16 %v293
    %v493 = vunpack.c.h.b16 %v293
    %v494 = vunpack.c.l.b16 %v294
    %v495 = vunpack.c.h.b16 %v294
    %v496 = vunpack.c.l.b16 %v295
    %v497 = vunpack.c.h.b16 %v295
    %v498 = vunpack.c.l.b16 %v296
    %v499 = vunpack.c.h.b16 %v296
    %v500 = vunpack.c.l.b16 %v297
    %v501 = vunpack.c.h.b16 %v297
    %v502 = vpack.c.b16 %v376, %v374
    %v503 = vpack.c.b16 %v377, %v375
    %v504 = vpack.c.b16 %v380, %v378
    %v505 = vpack.c.b16 %v381, %v379
    %v506 = vpack.c.b16 %v384, %v382
    %v507 = vpack.c.b16 %v385, %v383
    %v508 = vpack.c.b16 %v388, %v386
    %v509 = vpack.c.b16 %v389, %v387
    %v510 = vpack.c.b16 %v392, %v390
    %v511 = vpack.c.b16 %v393, %v391
    %v512 = vpack.c.b16 %v396, %v394
    %v513 = vpack.c.b16 %v397, %v395
    %v514 = vpack.c.b16 %v400, %v398
    %v515 = vpack.c.b16 %v401, %v399
    %v516 = vpack.c.b16 %v404, %v402
    %v517 = vpack.c.b16 %v405, %v403
    %v518 = vpack.c.b16 %v408, %v406
    %v519 = vpack.c.b16 %v409, %v407
    %v520 = vpack.c.b16 %v412, %v410
    %v521 = vpack.c.b16 %v413, %v411
    %v522 = vpack.c.b16 %v416, %v414
    %v523 = vpack.c.b16 %v417, %v415
    %v524 = vpack.c.b16 %v420, %v418
    %v525 = vpack.c.b16 %v421, %v419
    %v526 = vpack.c.b16 %v424, %v422
    %v527 = vpack.c.b16 %v425, %v423
    %v528 = vpack.c.b16 %v428, %v426
    %v529 = vpack.c.b16 %v429, %v427
    %v530 = vpack.c.b16 %v432, %v430
    %v531 = vpack.c.b16 %v433, %v431
    %v532 = vpack.c.b16 %v436, %v434
    %v533 = vpack.c.b16 %v437, %v435
    %v534 = vpack.c.b16 %v440, %v438
    %v535 = vpack.c.b16 %v441, %v439
    %v536 = vpack.c.b16 %v444, %v442
    %v537 = vpack.c.b16 %v445, %v443
    %v538 = vpack.c.b16 %v448, %v446
    %v539 = vpack.c.b16 %v449, %v447
    %v540 = vpack.c.b16 %v452, %v450
    %v541 = vpack.c.b16 %v453, %v451
    %v542 = vpack.c.b16 %v456, %v454
    %v543 = vpack.c.b16 %v457, %v455
    %v544 = vpack.c.b16 %v460, %v458
    %v545 = vpack.c.b16 %v461, %v459
    %v546 = vpack.c.b16 %v464, %v462
    %v547 = vpack.c.b16 %v465, %v463
    %v548 = vpack.c.b16 %v468, %v466
    %v549 = vpack.c.b16 %v469, %v467
    %v550 = vpack.c.b16 %v472, %v470
    %v551 = vpack.c.b16 %v473, %v471
    %v552 = vpack.c.b16 %v476, %v474
    %v553 = vpack.c.b16 %v477, %v475
    %v554 = vpack.c.b16 %v480, %v478
    %v555 = vpack.c.b16 %v481, %v479
    %v556 = vpack.c.b16 %v484, %v482
    %v557 = vpack.c.b16 %v485, %v483
    %v558 = vpack.c.b16 %v488, %v486
    %v559 = vpack.c.b16 %v489, %v487
    %v560 = vpack.c.b16 %v492, %v490
    %v561 = vpack.c.b16 %v493, %v491
    %v562 = vpack.c.b16 %v496, %v494
    %v563 = vpack.c.b16 %v497, %v495
    %v564 = vpack.c.b16 %v500, %v498
    %v565 = vpack.c.b16 %v501, %v499
    %630 = vmatprep.subr.bf16.mxu0 %v503
    %631 = vmatpush1.bf16.msra.mxu0 %v502
    %632 = vmatprep.subr.bf16.mxu0 %v505
    %633 = vmatpush1.bf16.msra.mxu0 %v504
    %634 = vmatprep.subr.bf16.mxu0 %v507
    %635 = vmatpush1.bf16.msra.mxu0 %v506
    %636 = vmatprep.subr.bf16.mxu0 %v509
    %637 = vmatpush1.bf16.msra.mxu0 %v508
    %638 = vmatprep.subr.bf16.mxu0 %v511
    %639 = vmatpush1.bf16.msra.mxu0 %v510
    %640 = vmatprep.subr.bf16.mxu0 %v513
    %641 = vmatpush1.bf16.msra.mxu0 %v512
    %642 = vmatprep.subr.bf16.mxu0 %v515
    %643 = vmatpush1.bf16.msra.mxu0 %v514
    %644 = vmatprep.subr.bf16.mxu0 %v517
    %645 = vmatpush1.bf16.msra.mxu0 %v516
    %646 = vmatprep.subr.bf16.mxu0 %v519
    %647 = vmatpush1.bf16.msra.mxu0 %v518
    %648 = vmatprep.subr.bf16.mxu0 %v521
    %649 = vmatpush1.bf16.msra.mxu0 %v520
    %650 = vmatprep.subr.bf16.mxu0 %v523
    %651 = vmatpush1.bf16.msra.mxu0 %v522
    %652 = vmatprep.subr.bf16.mxu0 %v525
    %653 = vmatpush1.bf16.msra.mxu0 %v524
    %654 = vmatprep.subr.bf16.mxu0 %v527
    %655 = vmatpush1.bf16.msra.mxu0 %v526
    %656 = vmatprep.subr.bf16.mxu0 %v529
    %657 = vmatpush1.bf16.msra.mxu0 %v528
    %658 = vmatprep.subr.bf16.mxu0 %v531
    %659 = vmatpush1.bf16.msra.mxu0 %v530
    %660 = vmatprep.subr.bf16.mxu0 %v533
    %661 = vmatpush1.bf16.msra.mxu0 %v532
    %662 = vmatprep.mubr.bf16.mxu0 %v231
    %663 = vmatmul.mubr.bf16.gmra.mrb[0].mxu0 %v230
    %v664 = vpop.f32.mrb[0].mxu0
    %v665 = vadd.f32 %v303, %v664
    %v666 = vpop.f32.mrb[0].mxu0
    %v667 = vadd.f32 %v307, %v666
    %v668 = vpop.f32.mrb[0].mxu0
    %v669 = vpop.f32.mrb[0].mxu0
    %670 = vdwg.mxu0
    %671 = vmatprep.subr.bf16.mxu0 %v535
    %672 = vmatpush1.bf16.msra.mxu0 %v534
    %673 = vmatprep.subr.bf16.mxu0 %v537
    %674 = vmatpush1.bf16.msra.mxu0 %v536
    %675 = vmatprep.subr.bf16.mxu0 %v539
    %676 = vmatpush1.bf16.msra.mxu0 %v538
    %677 = vmatprep.subr.bf16.mxu0 %v541
    %678 = vmatpush1.bf16.msra.mxu0 %v540
    %679 = vmatprep.subr.bf16.mxu0 %v543
    %680 = vmatpush1.bf16.msra.mxu0 %v542
    %681 = vmatprep.subr.bf16.mxu0 %v545
    %682 = vmatpush1.bf16.msra.mxu0 %v544
    %683 = vmatprep.subr.bf16.mxu0 %v547
    %684 = vmatpush1.bf16.msra.mxu0 %v546
    %685 = vmatprep.subr.bf16.mxu0 %v549
    %686 = vmatpush1.bf16.msra.mxu0 %v548
    %687 = vmatprep.subr.bf16.mxu0 %v551
    %688 = vmatpush1.bf16.msra.mxu0 %v550
    %689 = vmatprep.subr.bf16.mxu0 %v553
    %690 = vmatpush1.bf16.msra.mxu0 %v552
    %691 = vmatprep.subr.bf16.mxu0 %v555
    %692 = vmatpush1.bf16.msra.mxu0 %v554
    %693 = vmatprep.subr.bf16.mxu0 %v557
    %694 = vmatpush1.bf16.msra.mxu0 %v556
    %695 = vmatprep.subr.bf16.mxu0 %v559
    %696 = vmatpush1.bf16.msra.mxu0 %v558
    %697 = vmatprep.subr.bf16.mxu0 %v561
    %698 = vmatpush1.bf16.msra.mxu0 %v560
    %699 = vmatprep.subr.bf16.mxu0 %v563
    %700 = vmatpush1.bf16.msra.mxu0 %v562
    %701 = vmatprep.subr.bf16.mxu0 %v565
    %702 = vmatpush1.bf16.msra.mxu0 %v564
    %703 = vmatprep.mubr.bf16.mxu0 %v233
    %704 = vmatmul.mubr.bf16.gmra.mrb[0].mxu0 %v232
    %v705 = vpop.f32.mrb[0].mxu0
    %v706 = vadd.f32 %v665, %v705
    %v707 = vpop.f32.mrb[0].mxu0
    %v708 = vadd.f32 %v667, %v707
    %v709 = vpop.f32.mrb[0].mxu0
    %v710 = vpop.f32.mrb[0].mxu0
    %711 = vdwg.mxu0
    %712 = vst [vmem:[#allocation8] sm:$0xff] %v706
    %713 = vst [vmem:[#allocation8 + $0x8] sm:$0xff] %v708
    // Predicated region
    $region34: #{tpu_custom_call.1} parent=1 // pred_check
      _
    $region35: #{tpu_custom_call.1} parent=1 // pred_check_branch
      %715 = sbr.rel (0) target = $region37
    $region36: #{tpu_custom_call.1} parent=1 // pred_region
      %s717 = ssub.s32 256, 256
      %718 = vsyncadd [#allocation4], %s717
      %s720 = sshll.u32 [#allocation8], 4
      %s721 = int_to_ptr.vmem [resolvable:$true] %s720
      %723 = dma.vmem_to_hbm [thread:$0]  %s721, 256, %s5, [#allocation4]
    $region37: #{tpu_custom_call.1} parent=1 // pred_fallthru
      _
    // Predicated region
    $region38: #{tpu_custom_call.1} parent=1 // pred_check
      _
    $region39: #{tpu_custom_call.1} parent=1 // pred_check_branch
      %725 = sbr.rel (0) target = $region41
    $region40: #{tpu_custom_call.1} parent=1 // pred_region
      %726 = dma.done [#allocation4], 256
    $region41: #{tpu_custom_call.1} parent=1 // pred_fallthru
      _
    %727 = vsyncpa [#allocation3], 1
    %728 = vsyncpa [#allocation6], 1
    %729 = vsyncpa [#allocation4], 1

</llo_original>
